<compile_context>
chip_gen: v6e
topology: v6e:2x2x1
jax: 0.10.0
libtpu: 0.0.40
codegen_flags: <defaults>
</compile_context>

<pallas_src>
import functools

import numpy as np
import jax
import jax.numpy as jnp
from jax.experimental import pallas as pl
from jax.experimental.pallas import tpu as pltpu


def _round_up(n: int, m: int) -> int:
    return (n + m - 1) // m * m


def _make_pe_table(max_len: int, d_model: int) -> jnp.ndarray:
    """Standard sinusoidal positional encoding table, shape (max_len, 1, d_model)."""
    position = np.arange(max_len, dtype=np.float64)[:, None]
    div_term = np.exp(np.arange(0, d_model, 2, dtype=np.float64)
                      * (-np.log(10000.0) / d_model))
    pe = np.zeros((max_len, d_model), dtype=np.float64)
    pe[:, 0::2] = np.sin(position * div_term)
    pe[:, 1::2] = np.cos(position * div_term)
    return jnp.asarray(pe[:, None, :], dtype=jnp.float32)  # (max_len, 1, D)


def prepare_timestep_embedder_params(pe, w1, b1, w2, b2):
    """One-time (parameter-load) prep.

    Folds Linear1 into the PE table (M1 = pe @ W1.T + b1, exact), pre-transposes W2 to
    (in, out), and packs [M1 ; W2.T ; b2] into a single f32 slab with 8-sublane-aligned
    static section offsets so the kernel needs only one VMEM operand DMA.
    Returns (slab, meta) with meta = dict(max_len, D, off_w2, off_b2).
    """
    max_len, _, D = pe.shape
    pe2d = jnp.asarray(pe, jnp.float32).reshape(max_len, D)
    w1f = jnp.asarray(w1, jnp.float32)
    b1f = jnp.asarray(b1, jnp.float32)
    w2f = jnp.asarray(w2, jnp.float32)
    b2f = jnp.asarray(b2, jnp.float32)

    m1 = pe2d @ w1f.T + b1f                       # (max_len, D): Linear1 folded away
    w2t = w2f.T                                   # (D, D) in (in, out) layout

    off_w2 = _round_up(max_len, 8)                # 8-aligned sublane offsets
    off_b2 = off_w2 + _round_up(D, 8)
    rows = off_b2 + 8
    slab = jnp.zeros((rows, D), jnp.float32)
    slab = slab.at[:max_len, :].set(m1)
    slab = slab.at[off_w2:off_w2 + D, :].set(w2t)
    slab = slab.at[off_b2, :].set(b2f)

    meta = dict(max_len=max_len, D=D, off_w2=off_w2, off_b2=off_b2)
    return slab, meta


def _timestep_embed_kernel(ts_ref, slab_ref, o_ref, *, B, D, off_w2, off_b2):
    # ts_ref  : (B,) int32 in SMEM               timestep indices (pre-clamped)
    # slab_ref: (rows, D) f32 in VMEM            packed [M1 ; W2.T ; b2] slab
    # o_ref   : (1, B, D) f32                    already-permuted output
    #
    # Gather the pre-folded rows M1[t] = pe[t] @ W1.T + b1 with B unrolled dynamic
    # sublane slices (no iota/one-hot, no extra MXU op on the serialized chain).
    rows = [slab_ref[pl.ds(ts_ref[i], 1), :] for i in range(B)]     # each (1, D)
    x = jnp.concatenate(rows, axis=0) if B > 1 else rows[0]         # (B, D)

    # SiLU — sigmoid goes to the EUP slot, multiply to the VPU.
    h = x * jax.nn.sigmoid(h := x) if False else x * jax.nn.sigmoid(x)

    # Linear2: W2 already (in, out), so a plain MXU matmul with no operand transpose.
    w2t = slab_ref[pl.ds(off_w2, D), :]                             # (D, D)
    b2 = slab_ref[pl.ds(off_b2, 1), :]                              # (1, D)
    y = jnp.dot(h, w2t, preferred_element_type=jnp.float32) + b2

    # Write directly in the permuted (1, B, D) layout.
    o_ref[0] = y.astype(o_ref.dtype)


def timestep_embedder_forward(timesteps, slab, meta):
    """timesteps: (B,) int indices.  slab/meta: from prepare_timestep_embedder_params.

    Returns (1, B, D), matching `self.time_embed(pe[timesteps]).permute(1, 0, 2)`.
    """
    max_len, D = meta["max_len"], meta["D"]
    B = timesteps.shape[0]

    # Clamp rather than silently reading a wrong slab row for out-of-range indices.
    ts = jnp.clip(jnp.asarray(timesteps, jnp.int32), 0, max_len - 1)

    kernel = functools.partial(_timestep_embed_kernel, B=B, D=D,
                               off_w2=meta["off_w2"], off_b2=meta["off_b2"])
    cost = pl.CostEstimate(
        flops=2 * B * D * D + 4 * B * D,
        transcendentals=B * D,
        bytes_accessed=int(slab.size) * 4 + B * 4 + B * D * 4,
    )

    return pl.pallas_call(
        kernel,
        out_shape=jax.ShapeDtypeStruct((1, B, D), jnp.float32),
        in_specs=[pl.BlockSpec(memory_space=pltpu.MemorySpace.SMEM),   # timesteps
                  pl.BlockSpec(memory_space=pltpu.MemorySpace.VMEM)],  # packed slab
        out_specs=pl.BlockSpec(memory_space=pltpu.MemorySpace.VMEM),
        cost_estimate=cost,
    )(ts, slab)


if __name__ == "__main__":
    latent_dim = 32
    max_len = 64
    batch = 2

    key = jax.random.PRNGKey(0)
    k_ts, k_w1, k_b1, k_w2, k_b2 = jax.random.split(key, 5)

    # Deterministic synthetic parameters (PyTorch nn.Linear layout: (out, in)).
    scale = 1.0 / np.sqrt(latent_dim)
    w1 = jax.random.uniform(k_w1, (latent_dim, latent_dim), jnp.float32, -scale, scale)
    b1 = jax.random.uniform(k_b1, (latent_dim,), jnp.float32, -scale, scale)
    w2 = jax.random.uniform(k_w2, (latent_dim, latent_dim), jnp.float32, -scale, scale)
    b2 = jax.random.uniform(k_b2, (latent_dim,), jnp.float32, -scale, scale)

    pe = _make_pe_table(max_len, latent_dim)                 # (max_len, 1, D)
    timesteps = jax.random.randint(k_ts, (batch,), 0, max_len, jnp.int32)

    # One-time parameter prep (fold Linear1, transpose W2, pack the slab).
    slab, meta = prepare_timestep_embedder_params(pe, w1, b1, w2, b2)

    out = jax.block_until_ready(timestep_embedder_forward(timesteps, slab, meta))

    # Pure-JAX reference (same math as the PyTorch module).
    x_ref = pe[timesteps].reshape(batch, latent_dim)
    h_ref = x_ref @ w1.T + b1
    h_ref = h_ref * jax.nn.sigmoid(h_ref)
    ref = (h_ref @ w2.T + b2).reshape(batch, 1, latent_dim).transpose(1, 0, 2)

    assert out.shape == (1, batch, latent_dim), out.shape
    assert jnp.allclose(out, ref, atol=1e-5, rtol=1e-5), float(jnp.abs(out - ref).max())
    print("KERNEL_OK")
</pallas_src>

<mosaic_0001>
module attributes {stable_mosaic.version = 11 : i64} {
  func.func @_timestep_embed_kernel(%arg0: memref<2xi32, #tpu.memory_space<smem>>, %arg1: memref<104x32xf32, #tpu.memory_space<vmem>>, %arg2: memref<1x2x32xf32, #tpu.memory_space<vmem>>) attributes {dimension_semantics = [], scalar_prefetch = 0 : i64, scratch_operands = 0 : i64, tpu.core_type = #tpu.core_type<tc>} {
    %c0 = arith.constant 0 : index
    %0 = memref.load %arg0[%c0] : memref<2xi32, #tpu.memory_space<smem>>
    %1 = arith.index_cast %0 : i32 to index
    %c0_0 = arith.constant 0 : index
    %2 = vector.load %arg1[%1, %c0_0] : memref<104x32xf32, #tpu.memory_space<vmem>>, vector<1x32xf32>
    %c1 = arith.constant 1 : index
    %3 = memref.load %arg0[%c1] : memref<2xi32, #tpu.memory_space<smem>>
    %4 = arith.index_cast %3 : i32 to index
    %c0_1 = arith.constant 0 : index
    %5 = vector.load %arg1[%4, %c0_1] : memref<104x32xf32, #tpu.memory_space<vmem>>, vector<1x32xf32>
    %6 = tpu.concatenate %2, %5 in 0 : vector<1x32xf32>, vector<1x32xf32> -> vector<2x32xf32>
    %7 = arith.negf %6 : vector<2x32xf32>
    %8 = math.exp %7 : vector<2x32xf32>
    %cst = arith.constant 1.000000e+00 : f32
    %9 = vector.broadcast %cst : f32 to vector<2x32xf32>
    %10 = arith.addf %9, %8 : vector<2x32xf32>
    %11 = arith.divf %9, %10 : vector<2x32xf32>
    %12 = arith.mulf %6, %11 : vector<2x32xf32>
    %c64 = arith.constant 64 : index
    %c0_2 = arith.constant 0 : index
    %13 = vector.load %arg1[%c64, %c0_2] : memref<104x32xf32, #tpu.memory_space<vmem>>, vector<32x32xf32>
    %c96 = arith.constant 96 : index
    %c0_3 = arith.constant 0 : index
    %14 = vector.load %arg1[%c96, %c0_3] : memref<104x32xf32, #tpu.memory_space<vmem>>, vector<1x32xf32>
    %cst_4 = arith.constant dense<0.000000e+00> : vector<2x32xf32>
    %15 = tpu.matmul %12, %13, %cst_4 {dimension_numbers = #tpu.dot_dimension_numbers<[1], [0], [0], [1], [0, 0, 1, 1], [], []>} : vector<2x32xf32>, vector<32x32xf32>, vector<2x32xf32> -> vector<2x32xf32>
    %16 = vector.broadcast %14 : vector<1x32xf32> to vector<2x32xf32>
    %17 = arith.addf %15, %16 : vector<2x32xf32>
    %c0_5 = arith.constant 0 : index
    %c0_6 = arith.constant 0 : index
    %c0_7 = arith.constant 0 : index
    %18 = vector.load %arg2[%c0_5, %c0_6, %c0_7] : memref<1x2x32xf32, #tpu.memory_space<vmem>>, vector<1x2x32xf32>
    %19 = vector.shape_cast %18 : vector<1x2x32xf32> to vector<2x32xf32>
    %20 = vector.shape_cast %17 : vector<2x32xf32> to vector<1x2x32xf32>
    tpu.vector_store %arg2[%c0_5, %c0_6, %c0_7], %20 {strides = array<i32>} : memref<1x2x32xf32, #tpu.memory_space<vmem>>, vector<1x2x32xf32>,
    return
  }
}

</mosaic_0001>

<llo_original>
// kernel: tpu_custom_call.1
$region0: #{tpu_custom_call.1}
  #allocation0 [shape = 'u32[]', space=smem, size = 0x4, offset = 0x4, fixed_abs, tag = 'smem constant byte address 0x4 - core index']
  #allocation1 [shape = 'u32[144,128]{1,0:T(1,128)}', space=vmem, size = 0x12000, scoped, tag = 'internal scratch']
  %s0 = inlined_call_operand.vmem [shape: s32[2], index: 0, kind: input, shape index: {}]
  %s1 = inlined_call_operand.vmem [shape: f32[104,32], index: 1, kind: input, shape index: {}]
  %s2 = inlined_call_operand.hbm [shape: f32[1,2,32], index: 2, kind: output, shape index: {}]
  %s3 = sld [smem:[#allocation0]]
  $region22: #{tpu_custom_call.1} parent=0
    _
  %s5 = ssub.s32 1, %s3
  %s6 = scalar_select 0, %s5, %s3
  $region1: #{tpu_custom_call.1} parent=0
    #allocation2 [shape = 'u8[512]{0}', space=smem, size = 0x200, scoped, tag = 'input window, operand 0, single buffered']
    #allocation3 [shape = 's32[1]{0}', space=sflag, size = 0x4, scoped, tag = 'scoped memory for tpu_custom_call.1']
    #allocation4 [shape = 's32[1]{0}', space=sflag, size = 0x4, scoped, tag = 'scoped memory for tpu_custom_call.1']
    #allocation5 [shape = 'u8[1024]{0}', space=vmem, size = 0x400, scoped, tag = 'output window, operand 0, single buffered']
    %7 = vsyncpa [#allocation4], 0
    %8 = vsyncpa [#allocation3], 0
    // Predicated region
    $region2: #{tpu_custom_call.1} parent=1 // pred_check
      _
    $region3: #{tpu_custom_call.1} parent=1 // pred_check_branch
      %10 = sbr.rel (0) target = $region5
    $region4: #{tpu_custom_call.1} parent=1 // pred_region
      %s12 = ssub.s32 16, 16
      %13 = vsyncadd [#allocation4], %s12
      %s15 = sshll.u32 %s0, 4
      %s16 = int_to_ptr.vmem [resolvable:$true] %s15
      %18 = dma.vmem_to_smem %s16, 16, [#allocation2], [#allocation4]
    $region5: #{tpu_custom_call.1} parent=1 // pred_fallthru
      _
    // Predicated region
    $region6: #{tpu_custom_call.1} parent=1 // pred_check
      _
    $region7: #{tpu_custom_call.1} parent=1 // pred_check_branch
      %20 = sbr.rel (0) target = $region9
    $region8: #{tpu_custom_call.1} parent=1 // pred_region
      _
    $region9: #{tpu_custom_call.1} parent=1 // pred_fallthru
      _
    // Predicated region
    $region10: #{tpu_custom_call.1} parent=1 // pred_check
      _
    $region11: #{tpu_custom_call.1} parent=1 // pred_check_branch
      %22 = sbr.rel (0) target = $region13
    $region12: #{tpu_custom_call.1} parent=1 // pred_region
      %23 = dma.done [#allocation4], 16
    $region13: #{tpu_custom_call.1} parent=1 // pred_fallthru
      _
    %24 = sfence
    %s25 = sld [smem:[#allocation2]]
    %s26 = scalar_lea.vmem %s1, %s25
    %v27 = vld [vmem:[%s26] sm:$0x1]
    %s28 = sld [smem:[#allocation2 + $0x1]]
    %s29 = scalar_lea.vmem %s1, %s28
    %v30 = vld [vmem:[%s29] sm:$0x1]
    %v32 = vrot.slane %v30, 7
    %vm34 = vcmask 1040384
    %v35 = vsel %vm34, %v27, %v32
    %v36 = vxor.u32 %v35, 2147483648
    %v37 = vmul.f32 %v36, 1.442695
    %v38 = vpow.pop %v37
    %v39 = vadd.f32 %v38, 1.0
    %v40 = vrcp.pop %v39
    %v41 = vmul.f32 1.0, %v40
    %v42 = vmul.f32 %v35, %v41
    %v43 = vld [vmem:[%s1 + $0x40] sm:$0xff]
    %v44 = vld [vmem:[%s1 + $0x48] sm:$0xff]
    %v45 = vld [vmem:[%s1 + $0x50] sm:$0xff]
    %v46 = vld [vmem:[%s1 + $0x58] sm:$0xff]
    %v47 = vld [vmem:[%s1 + $0x60] sm:$0x1]
    %v48 = vlaneseq
    %v49 = vshrl.u32 %v48, 7
    %v50 = vsub.s32 0, %v49
    %v51 = vrot.slane %v47, %v50
    %vm52 = vcmask 261120
    %v54 = vsel %vm52, %v42, 0
    %56 = vmatprep.subr.mxu0 0.0
    %57 = vmatpush1.msra.mxu0 0.0
    %58 = vmatprep.subr.mxu0 0.0
    %59 = vmatpush1.msra.mxu0 0.0
    %60 = vmatprep.subr.mxu0 0.0
    %61 = vmatpush1.msra.mxu0 0.0
    %62 = vmatprep.subr.mxu0 0.0
    %63 = vmatpush1.msra.mxu0 0.0
    %64 = vmatprep.subr.mxu0 0.0
    %65 = vmatpush1.msra.mxu0 0.0
    %66 = vmatprep.subr.mxu0 0.0
    %67 = vmatpush1.msra.mxu0 0.0
    %68 = vmatprep.subr.mxu0 0.0
    %69 = vmatpush1.msra.mxu0 0.0
    %70 = vmatprep.subr.mxu0 0.0
    %71 = vmatpush1.msra.mxu0 0.0
    %72 = vmatprep.subr.mxu0 0.0
    %73 = vmatpush1.msra.mxu0 0.0
    %74 = vmatprep.subr.mxu0 0.0
    %75 = vmatpush1.msra.mxu0 0.0
    %76 = vmatprep.subr.mxu0 0.0
    %77 = vmatpush1.msra.mxu0 0.0
    %78 = vmatprep.subr.mxu0 0.0
    %79 = vmatpush1.msra.mxu0 0.0
    %80 = vmatprep.subr.mxu0 0.0
    %81 = vmatpush1.msra.mxu0 %v46
    %82 = vmatprep.subr.mxu0 0.0
    %83 = vmatpush1.msra.mxu0 %v45
    %84 = vmatprep.subr.mxu0 0.0
    %85 = vmatpush1.msra.mxu0 %v44
    %86 = vmatprep.subr.mxu0 0.0
    %87 = vmatpush1.msra.mxu0 %v43
    %88 = vmatprep.subr.mxu0 0.0
    %89 = vmatpush2.msra.mxu0 0.0
    %90 = vmatprep.subr.mxu0 0.0
    %91 = vmatpush2.msra.mxu0 0.0
    %92 = vmatprep.subr.mxu0 0.0
    %93 = vmatpush2.msra.mxu0 0.0
    %94 = vmatprep.subr.mxu0 0.0
    %95 = vmatpush2.msra.mxu0 0.0
    %96 = vmatprep.subr.mxu0 0.0
    %97 = vmatpush2.msra.mxu0 0.0
    %98 = vmatprep.subr.mxu0 0.0
    %99 = vmatpush2.msra.mxu0 0.0
    %100 = vmatprep.subr.mxu0 0.0
    %101 = vmatpush2.msra.mxu0 0.0
    %102 = vmatprep.subr.mxu0 0.0
    %103 = vmatpush2.msra.mxu0 0.0
    %104 = vmatprep.subr.mxu0 0.0
    %105 = vmatpush2.msra.mxu0 0.0
    %106 = vmatprep.subr.mxu0 0.0
    %107 = vmatpush2.msra.mxu0 0.0
    %108 = vmatprep.subr.mxu0 0.0
    %109 = vmatpush2.msra.mxu0 0.0
    %110 = vmatprep.subr.mxu0 0.0
    %111 = vmatpush2.msra.mxu0 0.0
    %112 = vmatprep.subr.mxu0 0.0
    %113 = vmatpush2.msra.mxu0 0.0
    %114 = vmatprep.subr.mxu0 0.0
    %115 = vmatpush2.msra.mxu0 0.0
    %116 = vmatprep.subr.mxu0 0.0
    %117 = vmatpush2.msra.mxu0 0.0
    %118 = vmatprep.subr.mxu0 0.0
    %119 = vmatpush2.msra.mxu0 0.0
    %120 = vmatprep.mubr.f32.mxu0 0.0
    %121 = vmatmul.mubr.f32.gmra.mxu0 %v54
    %v122 = vpop.f32.mrf.mxu0
    %v123 = vadd.f32 %v51, %v122
    %v124 = vpop.f32.mrf.mxu0
    %125 = vdwg.mxu0
    %vm126 = vcmask 254976
    %127 = vst.msk [vmem:[#allocation5] sm:$0x3] %vm126, %v123
    // Predicated region
    $region14: #{tpu_custom_call.1} parent=1 // pred_check
      _
    $region15: #{tpu_custom_call.1} parent=1 // pred_check_branch
      %129 = sbr.rel (0) target = $region17
    $region16: #{tpu_custom_call.1} parent=1 // pred_region
      %s131 = ssub.s32 32, 32
      %132 = vsyncadd [#allocation3], %s131
      %s134 = sshll.u32 [#allocation5], 4
      %s135 = int_to_ptr.vmem [resolvable:$true] %s134
      %137 = dma.vmem_to_hbm [thread:$0]  %s135, 32, %s2, [#allocation3]
    $region17: #{tpu_custom_call.1} parent=1 // pred_fallthru
      _
    // Predicated region
    $region18: #{tpu_custom_call.1} parent=1 // pred_check
      _
    $region19: #{tpu_custom_call.1} parent=1 // pred_check_branch
      %139 = sbr.rel (0) target = $region21
    $region20: #{tpu_custom_call.1} parent=1 // pred_region
      %140 = dma.done [#allocation3], 32
    $region21: #{tpu_custom_call.1} parent=1 // pred_fallthru
      _
    %141 = vsyncpa [#allocation3], 1
    %142 = vsyncpa [#allocation4], 1

</llo_original>
